<compile_context>
chip_gen: v6e
topology: v6e:2x2x1
jax: 0.10.0
libtpu: 0.0.40
codegen_flags: <defaults>
</compile_context>

<pallas_src>
import functools

import jax
import jax.numpy as jnp
from jax.experimental import pallas as pl
from jax.experimental.pallas import tpu as pltpu


def _round_up(a, m):
    return (a + m - 1) // m * m


def _fused_linear_kernel(x_ref, w_ref, b_ref, o_ref, acc_ref):
    # x_ref: [tm, tk] bf16, w_ref: [tk, tn] bf16, b_ref: [1, tn] f32,
    # o_ref: [tm, tn] f32, acc_ref: [tm, tn] f32 (VMEM scratch).
    k = pl.program_id(2)

    @pl.when(k == 0)
    def _():
        acc_ref[...] = jnp.zeros_like(acc_ref)

    acc_ref[...] += jnp.dot(
        x_ref[...], w_ref[...], preferred_element_type=jnp.float32
    )

    @pl.when(k == pl.num_programs(2) - 1)
    def _():
        # Bias add in f32 (cheap on VPU; avoids bf16 elementwise on v5e).
        o_ref[...] = (acc_ref[...] + b_ref[...]).astype(o_ref.dtype)


def fused_linear(x, w, b):
    """Compute x @ w + b with a tiled, pipelined Pallas kernel.

    x: [B, H] f32 (cast to bf16 for the MXU), w: [H, O] f32, b: [O] f32.
    Returns [B, O] f32.
    """
    B, H = x.shape
    H2, O = w.shape
    assert H == H2

    # Tile sizes: lane-dense (multiples of 128) on the K / O axes, sublane
    # multiple of 16 (bf16) on the batch axis. Capped so that the double
    # buffered tiles fit comfortably under the scoped-VMEM default on every
    # chip (incl. v7x's 64 MiB physical / 32 MiB default scoped VMEM):
    #   x: 256*512*2 + w: 512*512*2 + out/acc: 256*512*4*2  (~2.5 MiB w/ 2x buf)
    tm = min(256, _round_up(B, 16))
    tk = min(512, _round_up(H, 128))
    tn = min(512, _round_up(O, 128))

    B_pad = _round_up(B, tm)
    H_pad = _round_up(H, tk)
    O_pad = _round_up(O, tn)

    # Zero-pad + cast at the wrapper boundary. bf16 inputs, f32 bias.
    x_p = jnp.zeros((B_pad, H_pad), jnp.bfloat16)
    x_p = x_p.at[:B, :H].set(x.astype(jnp.bfloat16))
    w_p = jnp.zeros((H_pad, O_pad), jnp.bfloat16)
    w_p = w_p.at[:H, :O].set(w.astype(jnp.bfloat16))
    b_p = jnp.zeros((1, O_pad), jnp.float32)
    b_p = b_p.at[0, :O].set(b.astype(jnp.float32))

    grid = (B_pad // tm, O_pad // tn, H_pad // tk)

    cost = pl.CostEstimate(
        flops=2 * B_pad * H_pad * O_pad,
        transcendentals=0,
        bytes_accessed=(
            x_p.size * 2 + w_p.size * 2 + b_p.size * 4 + B_pad * O_pad * 4
        ),
    )

    out = pl.pallas_call(
        _fused_linear_kernel,
        out_shape=jax.ShapeDtypeStruct((B_pad, O_pad), jnp.float32),
        grid_spec=pltpu.PrefetchScalarGridSpec(
            num_scalar_prefetch=0,
            grid=grid,
            in_specs=[
                pl.BlockSpec((tm, tk), lambda i, j, k: (i, k)),
                pl.BlockSpec((tk, tn), lambda i, j, k: (k, j)),
                pl.BlockSpec((1, tn), lambda i, j, k: (0, j)),
            ],
            out_specs=pl.BlockSpec((tm, tn), lambda i, j, k: (i, j)),
            scratch_shapes=[pltpu.VMEM((tm, tn), jnp.float32)],
        ),
        compiler_params=pltpu.CompilerParams(
            dimension_semantics=("parallel", "parallel", "arbitrary"),
        ),
        cost_estimate=cost,
    )(x_p, w_p, b_p)

    return out[:B, :O]


class BertPredictorPallas:
    """JAX/Pallas re-implementation of BertPredictor's forward pass."""

    def __init__(self, hidden_size, articles_number, article_sources_number,
                 accusations_number, key):
        self.hidden_size = hidden_size
        self.articles_number = articles_number
        self.article_sources_number = article_sources_number
        self.accusations_number = accusations_number

        out_dims = [articles_number * 2,
                    article_sources_number * 2,
                    accusations_number * 2]
        keys = jax.random.split(key, 2 * len(out_dims))

        ws, bs = [], []
        for idx, od in enumerate(out_dims):
            # PyTorch nn.Linear default init: U(-1/sqrt(in), 1/sqrt(in))
            bound = 1.0 / (hidden_size ** 0.5)
            w = jax.random.uniform(keys[2 * idx], (hidden_size, od),
                                   minval=-bound, maxval=bound,
                                   dtype=jnp.float32)
            bvec = jax.random.uniform(keys[2 * idx + 1], (od,),
                                      minval=-bound, maxval=bound,
                                      dtype=jnp.float32)
            ws.append(w)
            bs.append(bvec)

        # Fuse the three heads along the output axis: one matmul on the MXU.
        self.w_all = jnp.concatenate(ws, axis=1)   # [H, sum(out_dims)]
        self.b_all = jnp.concatenate(bs, axis=0)   # [sum(out_dims)]
        self.out_dims = out_dims

    @functools.partial(jax.jit, static_argnums=0)
    def __call__(self, tensor):
        # tensor: [batch, hidden_size] float32
        batch = tensor.shape[0]
        logits = fused_linear(tensor, self.w_all, self.b_all)  # [B, O_total]

        o_art, o_src, o_acc = self.out_dims
        article = logits[:, :o_art]
        article_source = logits[:, o_art:o_art + o_src]
        accusation = logits[:, o_art + o_src:]

        return {
            'article': article.reshape(batch, -1, 2),
            'article_source': article_source.reshape(batch, -1, 2),
            'accusation': accusation.reshape(batch, -1, 2),
        }


if __name__ == "__main__":
    key = jax.random.PRNGKey(0)
    k_param, k_input = jax.random.split(key)

    batch = 2
    hidden_size = 32
    articles_number = 5
    article_sources_number = 3
    accusations_number = 7

    model = BertPredictorPallas(hidden_size, articles_number,
                                article_sources_number, accusations_number,
                                k_param)

    x = jax.random.normal(k_input, (batch, hidden_size), dtype=jnp.float32)

    out = model(x)
    jax.block_until_ready(out)

    # References: exact bf16-MXU reference (tight tol) + pure f32 (loose tol).
    ref_bf16 = jnp.dot(x.astype(jnp.bfloat16), model.w_all.astype(jnp.bfloat16),
                       preferred_element_type=jnp.float32) + model.b_all
    ref_f32 = x @ model.w_all + model.b_all

    o_art = articles_number * 2
    o_src = article_sources_number * 2
    assert out['article'].shape == (batch, articles_number, 2)
    assert out['article_source'].shape == (batch, article_sources_number, 2)
    assert out['accusation'].shape == (batch, accusations_number, 2)

    got = jnp.concatenate([out['article'].reshape(batch, -1),
                           out['article_source'].reshape(batch, -1),
                           out['accusation'].reshape(batch, -1)], axis=1)
    assert jnp.allclose(got, ref_bf16, atol=1e-4), "mismatch vs bf16-MXU ref"
    assert jnp.allclose(got, ref_f32, atol=5e-2), "mismatch vs f32 ref"

    print("KERNEL_OK")
</pallas_src>

<mosaic_0001>
module attributes {stable_mosaic.version = 11 : i64} {
  func.func @_fused_linear_kernel(%arg0: i32, %arg1: i32, %arg2: i32, %arg3: memref<16x128xbf16, #tpu.memory_space<vmem>>, %arg4: memref<128x128xbf16, #tpu.memory_space<vmem>>, %arg5: memref<1x128xf32, #tpu.memory_space<vmem>>, %arg6: memref<16x128xf32, #tpu.memory_space<vmem>>, %arg7: memref<16x128xf32, #tpu.memory_space<vmem>>) attributes {dimension_semantics = [#tpu.dimension_semantics<parallel>, #tpu.dimension_semantics<parallel>, #tpu.dimension_semantics<arbitrary>], iteration_bounds = array<i64: 1, 1, 1>, scalar_prefetch = 0 : i64, scratch_operands = 1 : i64, tpu.core_type = #tpu.core_type<tc>, window_params = [{transform_indices = @transform_0, window_bounds = array<i64: 16, 128>}, {transform_indices = @transform_1, window_bounds = array<i64: 128, 128>}, {transform_indices = @transform_2, window_bounds = array<i64: 1, 128>}, {transform_indices = @transform_3, window_bounds = array<i64: 16, 128>}]} {
    %c0_i32 = arith.constant 0 : i32
    %0 = arith.cmpi eq, %arg2, %c0_i32 : i32
    %1 = arith.extui %0 : i1 to i32
    %c0_i32_0 = arith.constant 0 : i32
    %2 = arith.cmpi ne, %1, %c0_i32_0 : i32
    scf.if %2 {
      %cst_10 = arith.constant 0.000000e+00 : f32
      %12 = vector.broadcast %cst_10 : f32 to vector<16x128xf32>
      %c0_11 = arith.constant 0 : index
      %c0_12 = arith.constant 0 : index
      %13 = vector.load %arg7[%c0_11, %c0_12] : memref<16x128xf32, #tpu.memory_space<vmem>>, vector<16x128xf32>
      tpu.vector_store %arg7[%c0_11, %c0_12], %12 {strides = array<i32>} : memref<16x128xf32, #tpu.memory_space<vmem>>, vector<16x128xf32>,
    } else {
    }
    %c0 = arith.constant 0 : index
    %c0_1 = arith.constant 0 : index
    %3 = vector.load %arg7[%c0, %c0_1] : memref<16x128xf32, #tpu.memory_space<vmem>>, vector<16x128xf32>
    %c0_2 = arith.constant 0 : index
    %c0_3 = arith.constant 0 : index
    %4 = vector.load %arg3[%c0_2, %c0_3] : memref<16x128xbf16, #tpu.memory_space<vmem>>, vector<16x128xbf16>
    %c0_4 = arith.constant 0 : index
    %c0_5 = arith.constant 0 : index
    %5 = vector.load %arg4[%c0_4, %c0_5] : memref<128x128xbf16, #tpu.memory_space<vmem>>, vector<128x128xbf16>
    %cst = arith.constant dense<0.000000e+00> : vector<16x128xf32>
    %6 = tpu.matmul %4, %5, %cst {dimension_numbers = #tpu.dot_dimension_numbers<[1], [0], [0], [1], [0, 0, 1, 1], [], []>} : vector<16x128xbf16>, vector<128x128xbf16>, vector<16x128xf32> -> vector<16x128xf32>
    %7 = arith.addf %3, %6 : vector<16x128xf32>
    %c0_6 = arith.constant 0 : index
    %c0_7 = arith.constant 0 : index
    %8 = vector.load %arg7[%c0_6, %c0_7] : memref<16x128xf32, #tpu.memory_space<vmem>>, vector<16x128xf32>
    tpu.vector_store %arg7[%c0_6, %c0_7], %7 {strides = array<i32>} : memref<16x128xf32, #tpu.memory_space<vmem>>, vector<16x128xf32>,
    %c0_i32_8 = arith.constant 0 : i32
    %9 = arith.cmpi eq, %arg2, %c0_i32_8 : i32
    %10 = arith.extui %9 : i1 to i32
    %c0_i32_9 = arith.constant 0 : i32
    %11 = arith.cmpi ne, %10, %c0_i32_9 : i32
    scf.if %11 {
      %c0_10 = arith.constant 0 : index
      %c0_11 = arith.constant 0 : index
      %12 = vector.load %arg7[%c0_10, %c0_11] : memref<16x128xf32, #tpu.memory_space<vmem>>, vector<16x128xf32>
      %c0_12 = arith.constant 0 : index
      %c0_13 = arith.constant 0 : index
      %13 = vector.load %arg5[%c0_12, %c0_13] : memref<1x128xf32, #tpu.memory_space<vmem>>, vector<1x128xf32>
      %14 = vector.broadcast %13 : vector<1x128xf32> to vector<16x128xf32>
      %15 = arith.addf %12, %14 : vector<16x128xf32>
      %c0_14 = arith.constant 0 : index
      %c0_15 = arith.constant 0 : index
      %16 = vector.load %arg6[%c0_14, %c0_15] : memref<16x128xf32, #tpu.memory_space<vmem>>, vector<16x128xf32>
      tpu.vector_store %arg6[%c0_14, %c0_15], %15 {strides = array<i32>} : memref<16x128xf32, #tpu.memory_space<vmem>>, vector<16x128xf32>,
    } else {
    }
    return
  }
  func.func @transform_0(%arg0: i32, %arg1: i32, %arg2: i32) -> (i32, i32) {
    %c0_i32 = arith.constant 0 : i32
    return %arg0, %arg2 : i32, i32
  }
  func.func @transform_1(%arg0: i32, %arg1: i32, %arg2: i32) -> (i32, i32) {
    %c0_i32 = arith.constant 0 : i32
    return %arg2, %arg1 : i32, i32
  }
  func.func @transform_2(%arg0: i32, %arg1: i32, %arg2: i32) -> (i32, i32) {
    %c0_i32 = arith.constant 0 : i32
    %c0_i32_0 = arith.constant 0 : i32
    return %c0_i32, %arg1 : i32, i32
  }
  func.func @transform_3(%arg0: i32, %arg1: i32, %arg2: i32) -> (i32, i32) {
    %c0_i32 = arith.constant 0 : i32
    return %arg0, %arg1 : i32, i32
  }
}

</mosaic_0001>

<llo_original>
// kernel: a_call__.1
$region0: #{a_call__.1}
  #allocation0 [shape = 'u32[]', space=smem, size = 0x4, offset = 0x4, fixed_abs, tag = 'smem constant byte address 0x4 - core index']
  #allocation1 [shape = 'u32[144,128]{1,0:T(1,128)}', space=vmem, size = 0x12000, scoped, tag = 'internal scratch']
  #allocation2 [shape = 'f32[16,128]{1,0:T(8,128)}', space=vmem, size = 0x2000, scoped, tag = 'scratch operand']
  %s0 = inlined_call_operand.vmem [shape: bf16[16,128], index: 0, kind: input, shape index: {}]
  %s1 = inlined_call_operand.hbm [shape: bf16[128,128], index: 1, kind: input, shape index: {}]
  %s2 = inlined_call_operand.vmem [shape: f32[1,128], index: 2, kind: input, shape index: {}]
  %s3 = inlined_call_operand.vmem [shape: f32[16,128], index: 3, kind: output, shape index: {}]
  %s4 = sld [smem:[#allocation0]]
  $region34: #{a_call__.1} parent=0
    _
  %s6 = ssub.s32 1, %s4
  %s7 = scalar_select 0, %s6, %s4
  $region1: #{a_call__.1} parent=0
    #allocation3 [shape = 'u8[32768]{0}', space=vmem, size = 0x8000, scoped, tag = 'input window, operand 1, single buffered']
    #allocation4 [shape = 's32[1]{0}', space=sflag, size = 0x4, scoped, tag = 'scoped memory for a_call__.1']
    %8 = vsyncpa [#allocation4], 0
    // Predicated region
    $region2: #{a_call__.1} parent=1 // pred_check
      _
    $region3: #{a_call__.1} parent=1 // pred_check_branch
      %10 = sbr.rel (0) target = $region5
    $region4: #{a_call__.1} parent=1 // pred_region
      _
    $region5: #{a_call__.1} parent=1 // pred_fallthru
      _
    // Predicated region
    $region6: #{a_call__.1} parent=1 // pred_check
      _
    $region7: #{a_call__.1} parent=1 // pred_check_branch
      %12 = sbr.rel (0) target = $region9
    $region8: #{a_call__.1} parent=1 // pred_region
      %s14 = ssub.s32 1024, 1024
      %15 = vsyncadd [#allocation4], %s14
      %s16 = sshll.u32 [#allocation3], 4
      %s17 = int_to_ptr.vmem [resolvable:$true] %s16
      %22 = dma.hbm_to_vmem [thread:$0]  %s1, 1024, %s17, [#allocation4], 64, 64, 4
    $region9: #{a_call__.1} parent=1 // pred_fallthru
      _
    // Predicated region
    $region10: #{a_call__.1} parent=1 // pred_check
      _
    $region11: #{a_call__.1} parent=1 // pred_check_branch
      %24 = sbr.rel (0) target = $region13
    $region12: #{a_call__.1} parent=1 // pred_region
      _
    $region13: #{a_call__.1} parent=1 // pred_fallthru
      _
    // Predicated region
    $region14: #{a_call__.1} parent=1 // pred_check
      _
    $region15: #{a_call__.1} parent=1 // pred_check_branch
      %26 = sbr.rel (0) target = $region17
    $region16: #{a_call__.1} parent=1 // pred_region
      %27 = dma.done [#allocation4], 1024
    $region17: #{a_call__.1} parent=1 // pred_fallthru
      _
    %p29 = scmp.eq.s32.totalorder 0, 0
    // Predicated region
    $region18: #{a_call__.1} parent=1 // pred_check
      %p30 = pneg %p29
    $region19: #{a_call__.1} parent=1 // pred_check_branch
      %32 = sbr.rel (%p30) target = $region21
    $region20: #{a_call__.1} parent=1 // pred_region
      %33 = vst [vmem:[#allocation2] sm:$0xff] 0.0
      %34 = vst [vmem:[#allocation2 + $0x8] sm:$0xff] 0.0
    $region21: #{a_call__.1} parent=1 // pred_fallthru
      _
    %v35 = vld [vmem:[#allocation2] sm:$0xff]
    %v36 = vld [vmem:[#allocation2 + $0x8] sm:$0xff]
    %v37 = vld [vmem:[%s0] sm:$0xf]
    %v38 = vld [vmem:[%s0 + $0x4] sm:$0xf]
    %v39 = vld [vmem:[#allocation3] sm:$0xf]
    %v40 = vld [vmem:[#allocation3 + $0x4] sm:$0xf]
    %v41 = vld [vmem:[#allocation3 + $0x8] sm:$0xf]
    %v42 = vld [vmem:[#allocation3 + $0xc] sm:$0xf]
    %v43 = vld [vmem:[#allocation3 + $0x10] sm:$0xf]
    %v44 = vld [vmem:[#allocation3 + $0x14] sm:$0xf]
    %v45 = vld [vmem:[#allocation3 + $0x18] sm:$0xf]
    %v46 = vld [vmem:[#allocation3 + $0x1c] sm:$0xf]
    %v47 = vld [vmem:[#allocation3 + $0x20] sm:$0xf]
    %v48 = vld [vmem:[#allocation3 + $0x24] sm:$0xf]
    %v49 = vld [vmem:[#allocation3 + $0x28] sm:$0xf]
    %v50 = vld [vmem:[#allocation3 + $0x2c] sm:$0xf]
    %v51 = vld [vmem:[#allocation3 + $0x30] sm:$0xf]
    %v52 = vld [vmem:[#allocation3 + $0x34] sm:$0xf]
    %v53 = vld [vmem:[#allocation3 + $0x38] sm:$0xf]
    %v54 = vld [vmem:[#allocation3 + $0x3c] sm:$0xf]
    %v57 = vunpack.c.l.b16 %v37
    %v58 = vunpack.c.l.b16 %v38
    %v59 = vpack.c.b16 %v58, %v57
    %v77 = vunpack.c.l.b16 %v39
    %v78 = vunpack.c.l.b16 %v40
    %v79 = vunpack.c.l.b16 %v41
    %v80 = vunpack.c.l.b16 %v42
    %v81 = vunpack.c.l.b16 %v43
    %v82 = vunpack.c.l.b16 %v44
    %v83 = vunpack.c.l.b16 %v45
    %v84 = vunpack.c.l.b16 %v46
    %v85 = vunpack.c.l.b16 %v47
    %v86 = vunpack.c.l.b16 %v48
    %v87 = vunpack.c.l.b16 %v49
    %v88 = vunpack.c.l.b16 %v50
    %v89 = vunpack.c.l.b16 %v51
    %v90 = vunpack.c.l.b16 %v52
    %v91 = vunpack.c.l.b16 %v53
    %v92 = vunpack.c.l.b16 %v54
    %v93 = vpack.c.b16 %v78, %v77
    %v94 = vpack.c.b16 %v80, %v79
    %v95 = vpack.c.b16 %v82, %v81
    %v96 = vpack.c.b16 %v84, %v83
    %v97 = vpack.c.b16 %v86, %v85
    %v98 = vpack.c.b16 %v88, %v87
    %v99 = vpack.c.b16 %v90, %v89
    %v100 = vpack.c.b16 %v92, %v91
    %109 = vmatprep.subr.bf16.mxu0 0
    %110 = vmatpush1.bf16.msra.mxu0 %v100
    %111 = vmatprep.subr.bf16.mxu0 0
    %112 = vmatpush1.bf16.msra.mxu0 %v99
    %113 = vmatprep.subr.bf16.mxu0 0
    %114 = vmatpush1.bf16.msra.mxu0 %v98
    %115 = vmatprep.subr.bf16.mxu0 0
    %116 = vmatpush1.bf16.msra.mxu0 %v97
    %117 = vmatprep.subr.bf16.mxu0 0
    %118 = vmatpush1.bf16.msra.mxu0 %v96
    %119 = vmatprep.subr.bf16.mxu0 0
    %120 = vmatpush1.bf16.msra.mxu0 %v95
    %121 = vmatprep.subr.bf16.mxu0 0
    %122 = vmatpush1.bf16.msra.mxu0 %v94
    %123 = vmatprep.subr.bf16.mxu0 0
    %124 = vmatpush1.bf16.msra.mxu0 %v93
    %125 = vmatprep.subr.bf16.mxu0 0
    %126 = vmatpush2.bf16.msra.mxu0 0
    %127 = vmatprep.subr.bf16.mxu0 0
    %128 = vmatpush2.bf16.msra.mxu0 0
    %129 = vmatprep.subr.bf16.mxu0 0
    %130 = vmatpush2.bf16.msra.mxu0 0
    %131 = vmatprep.subr.bf16.mxu0 0
    %132 = vmatpush2.bf16.msra.mxu0 0
    %133 = vmatprep.subr.bf16.mxu0 0
    %134 = vmatpush2.bf16.msra.mxu0 0
    %135 = vmatprep.subr.bf16.mxu0 0
    %136 = vmatpush2.bf16.msra.mxu0 0
    %137 = vmatprep.subr.bf16.mxu0 0
    %138 = vmatpush2.bf16.msra.mxu0 0
    %139 = vmatprep.subr.bf16.mxu0 0
    %140 = vmatpush2.bf16.msra.mxu0 0
    %141 = vmatprep.mubr.bf16.mxu0 0
    %142 = vmatmul.mubr.bf16.gmra.mxu0 %v59
    %v143 = vpop.f32.mrf.mxu0
    %v144 = vadd.f32 0.0, %v143
    %v145 = vpop.f32.mrf.mxu0
    %v146 = vpop.f32.mrf.mxu0
    %v147 = vadd.f32 0.0, %v146
    %v148 = vpop.f32.mrf.mxu0
    %149 = vdwg.mxu0
    %v150 = vadd.f32 %v35, %v144
    %v151 = vadd.f32 %v36, %v147
    %152 = vst [vmem:[#allocation2] sm:$0xff] %v150
    %153 = vst [vmem:[#allocation2 + $0x8] sm:$0xff] %v151
    // Predicated region
    $region22: #{a_call__.1} parent=1 // pred_check
      %p154 = pneg %p29
    $region23: #{a_call__.1} parent=1 // pred_check_branch
      %156 = sbr.rel (%p154) target = $region25
    $region24: #{a_call__.1} parent=1 // pred_region
      %v157 = vld [vmem:[#allocation2] sm:$0xff]
      %v158 = vld [vmem:[#allocation2 + $0x8] sm:$0xff]
      %v159 = vld [vmem:[%s2] sm:$0x1]
      %v161 = vlaneseq
      %v162 = vshrl.u32 %v161, 7
      %v163 = vsub.s32 0, %v162
      %v164 = vrot.slane %v159, %v163
      %v166 = vadd.f32 %v157, %v164
      %v167 = vadd.f32 %v158, %v164
      %168 = vst [vmem:[%s3] sm:$0xff] %v166
      %169 = vst [vmem:[%s3 + $0x8] sm:$0xff] %v167
    $region25: #{a_call__.1} parent=1 // pred_fallthru
      _
    // Predicated region
    $region26: #{a_call__.1} parent=1 // pred_check
      _
    $region27: #{a_call__.1} parent=1 // pred_check_branch
      %171 = sbr.rel (0) target = $region29
    $region28: #{a_call__.1} parent=1 // pred_region
      _
    $region29: #{a_call__.1} parent=1 // pred_fallthru
      _
    // Predicated region
    $region30: #{a_call__.1} parent=1 // pred_check
      _
    $region31: #{a_call__.1} parent=1 // pred_check_branch
      %173 = sbr.rel (0) target = $region33
    $region32: #{a_call__.1} parent=1 // pred_region
      _
    $region33: #{a_call__.1} parent=1 // pred_fallthru
      _
    %174 = vsyncpa [#allocation4], 1

</llo_original>
